<compile_context>
chip_gen: v5e
topology: v5e:2x2
jax: 0.10.0
libtpu: 0.0.40
codegen_flags: <defaults>
</compile_context>

<pallas_src>
import functools

import jax
import jax.numpy as jnp
from jax import lax
from jax.experimental import pallas as pl
from jax.experimental.pallas import tpu as pltpu


def _round_up(x, m):
    return (x + m - 1) // m * m


def _pick_vmem_limit_bytes():
    # ~3/4 of physical per-core VMEM: 96 MiB on v5e/v6e (128 MiB), 48 MiB on v7x (64 MiB).
    try:
        info = pltpu.get_tpu_info()
        cap = int(getattr(info, "vmem_capacity_bytes", 0) or 0)
        if cap > 0:
            return max(32 * 1024 * 1024, (cap * 3) // 4)
    except Exception:
        pass
    return 64 * 1024 * 1024


# ----------------------------------------------------------------------------
# Pallas kernel: fused conv (single K-folded matmul) + InstanceNorm2d +
# LeakyReLU(0.2), one grid step per (image, Cout tile).
# ----------------------------------------------------------------------------
def _down_kernel(x_ref, w_ref, mask_ref, o_ref, xs_ref, *, L, Ho, Wo, Cip, inv_cnt):
    # x_ref:    (4, Cip, Sp)   bf16  parity grids, flattened padded spatial
    # w_ref:    (Cot, 16*Cip)  bf16  K-folded conv weights (this Cout tile)
    # mask_ref: (1, Mp)        f32   1.0 on valid (non-virtual, non-pad) columns
    # o_ref:    (Cot, Mdp)     f32   channel-major, dense Ho*Wo (128-padded) lanes
    # xs_ref:   (16*Cip, Mp)   bf16  VMEM scratch: restacked matmul operand
    Mp = xs_ref.shape[1]
    Mdp = o_ref.shape[1]

    # ---- restack the 16 tap-shifted views into one K-folded operand ----------
    for g in range(4):                      # parity grid (ph, pw) = (g // 2, g % 2)
        for dh in range(2):
            for dw in range(2):
                t = g * 4 + 2 * dh + dw
                m0 = dh * L + dw            # static lane offset of this tap
                xs_ref[t * Cip:(t + 1) * Cip, :] = x_ref[g, :, m0:m0 + Mp]

    # ---- conv: one MXU matmul, K = 16*Cip (f32 accumulation) ------------------
    acc = jnp.dot(w_ref[...], xs_ref[...], preferred_element_type=jnp.float32)

    # ---- InstanceNorm2d over valid spatial positions (biased variance, f32) ---
    maskb = jnp.broadcast_to(mask_ref[...], acc.shape)        # hoisted, reused
    mean = jnp.sum(acc * maskb, axis=1, keepdims=True) * inv_cnt
    cen = acc - mean
    cm = cen * maskb
    var = jnp.sum(cm * cm, axis=1, keepdims=True) * inv_cnt
    y = cen * lax.rsqrt(var + 1e-5)

    # ---- LeakyReLU(0.2) --------------------------------------------------------
    y = jnp.where(y >= 0.0, y, 0.2 * y)

    # ---- compact the virtual column in VMEM; lane-dense final store -----------
    Md = Ho * Wo
    for i in range(Ho):
        o_ref[:, i * Wo:(i + 1) * Wo] = y[:, i * L:i * L + Wo].astype(o_ref.dtype)
    if Mdp > Md:  # static
        o_ref[:, Md:Mdp] = jnp.zeros((o_ref.shape[0], Mdp - Md), o_ref.dtype)


def unet_down_2d_bayesian(x, weight):
    """x: (N, Cin, H, W) float32 NCHW;  weight: (Cout, Cin, 4, 4) float32."""
    N, C_in, H, W = x.shape
    C_out = weight.shape[0]
    assert H % 2 == 0 and W % 2 == 0, "stride-2 down block expects even H, W"
    Ho, Wo = H // 2, W // 2
    L = Wo + 1                        # parity-grid row length (one virtual column)
    M = Ho * L                        # flattened conv-output length (with virtual col)
    Md = Ho * Wo                      # dense output length
    Mp = _round_up(M, 128)            # matmul / stats lane width
    Mdp = _round_up(Md, 128)          # output lane width (lane-dense stores)
    S = (Ho + 1) * L                  # flattened parity-grid length
    Sp = _round_up(L + 1 + Mp, 128)   # tap slices reach index (L+1)+Mp
    Cip = _round_up(C_in, 8)
    Cop = _round_up(C_out, 8)

    # Cout tiling: give the second TensorCore work when the batch axis can't be
    # split evenly (v7x has 2 TCs/chip).
    n_co = 2 if (N % 2 == 1 and Cop % 16 == 0) else 1
    co_tile = Cop // n_co

    # --- glue: bf16 cast first (halves this HBM pass), then pad + space-to-depth
    #     into 4 stride-2 parity grids (~input-sized, no 4x im2col blow-up). -----
    xg = jnp.pad(x.astype(jnp.bfloat16), ((0, 0), (0, 0), (1, 1), (1, 1)))
    xg = xg.reshape(N, C_in, Ho + 1, 2, Wo + 1, 2)
    xg = xg.transpose(0, 3, 5, 1, 2, 4)                       # (N,2,2,Cin,Ho+1,Wo+1)
    xg = xg.reshape(N, 4, C_in, S)
    xg = jnp.pad(xg, ((0, 0), (0, 0), (0, Cip - C_in), (0, Sp - S)))

    # K-folded weights: w2[o, t*Cip + c] = w[o, c, 2*dh+ph, 2*dw+pw],
    # t = (2*ph+pw)*4 + 2*dh+dw  (matches the in-kernel restack order).
    taps = [weight[:, :, 2 * dh + ph, 2 * dw + pw]
            for ph in (0, 1) for pw in (0, 1)
            for dh in (0, 1) for dw in (0, 1)]                 # each (Cout, Cin)
    w2 = jnp.stack(taps, axis=0)                               # (16, Cout, Cin)
    w2 = jnp.pad(w2, ((0, 0), (0, Cop - C_out), (0, Cip - C_in)))
    w2 = w2.transpose(1, 0, 2).reshape(Cop, 16 * Cip).astype(jnp.bfloat16)

    # Valid-column mask: drops the virtual column of each output row and the
    # 128-padding tail from the instance-norm statistics.
    idx = jnp.arange(Mp, dtype=jnp.int32)
    mask = (((idx % L) < Wo) & (idx < M)).astype(jnp.float32).reshape(1, Mp)

    kernel = functools.partial(_down_kernel, L=L, Ho=Ho, Wo=Wo, Cip=Cip,
                               inv_cnt=1.0 / float(Md))

    out = pl.pallas_call(
        kernel,
        out_shape=jax.ShapeDtypeStruct((N, Cop, Mdp), jnp.float32),
        grid=(N, n_co),
        in_specs=[
            pl.BlockSpec((None, 4, Cip, Sp), lambda n, c: (n, 0, 0, 0)),
            pl.BlockSpec((co_tile, 16 * Cip), lambda n, c: (c, 0)),
            pl.BlockSpec((1, Mp), lambda n, c: (0, 0)),
        ],
        out_specs=pl.BlockSpec((None, co_tile, Mdp), lambda n, c: (n, c, 0)),
        scratch_shapes=[pltpu.VMEM((16 * Cip, Mp), jnp.bfloat16)],
        compiler_params=pltpu.CompilerParams(
            dimension_semantics=("parallel", "parallel"),
            vmem_limit_bytes=_pick_vmem_limit_bytes()),
    )(xg, w2, mask)

    # Channel-major and spatially dense already; drop channel/lane padding -> NCHW.
    # (Free when Cop == C_out and Ho*Wo is a multiple of 128.)
    return out[:, :C_out, :Md].reshape(N, C_out, Ho, Wo)


# ----------------------------------------------------------------------------
# Deterministic Bayesian weight sampling (blitz-style posterior):
#   mu ~ 0 + 0.1*N(0,1), rho ~ -7 + 0.1*N(0,1), w = mu + log1p(exp(rho))*eps
# ----------------------------------------------------------------------------
def sample_bayesian_conv_weight(key, in_size, out_size):
    k_mu, k_rho, k_eps = jax.random.split(key, 3)
    shape = (out_size, in_size, 4, 4)
    mu = 0.1 * jax.random.normal(k_mu, shape, jnp.float32)
    rho = -7.0 + 0.1 * jax.random.normal(k_rho, shape, jnp.float32)
    eps = jax.random.normal(k_eps, shape, jnp.float32)
    sigma = jnp.log1p(jnp.exp(rho))
    return mu + sigma * eps


# ----------------------------------------------------------------------------
# Pure-JAX reference (f32 end-to-end) for a semantics self-check.
# ----------------------------------------------------------------------------
def reference_forward(x, weight):
    conv = lax.conv_general_dilated(
        x, weight, window_strides=(2, 2), padding=((1, 1), (1, 1)),
        dimension_numbers=("NCHW", "OIHW", "NCHW"))
    mean = jnp.mean(conv, axis=(2, 3), keepdims=True)
    var = jnp.mean((conv - mean) ** 2, axis=(2, 3), keepdims=True)
    y = (conv - mean) * lax.rsqrt(var + 1e-5)
    return jnp.where(y >= 0.0, y, 0.2 * y)


if __name__ == "__main__":
    key = jax.random.PRNGKey(0)
    k_x, k_w = jax.random.split(key)

    N, C_in, H, W = 2, 4, 16, 16
    C_out = 8

    x = jax.random.normal(k_x, (N, C_in, H, W), jnp.float32)
    weight = sample_bayesian_conv_weight(k_w, C_in, C_out)

    fwd = jax.jit(unet_down_2d_bayesian)
    out = jax.block_until_ready(fwd(x, weight))

    ref = jax.block_until_ready(reference_forward(x, weight))
    assert out.shape == (N, C_out, H // 2, W // 2), out.shape
    # bf16 MXU operands (f32 accumulation) -> loose tolerance vs f32 reference.
    err = float(jnp.max(jnp.abs(out - ref)))
    assert err < 5e-2, err

    print("KERNEL_OK")
</pallas_src>

<mosaic_0001>
module attributes {stable_mosaic.version = 11 : i64} {
  func.func @_down_kernel(%arg0: i32, %arg1: i32, %arg2: memref<1x4x8x256xbf16, #tpu.memory_space<vmem>>, %arg3: memref<8x128xbf16, #tpu.memory_space<vmem>>, %arg4: memref<1x128xf32, #tpu.memory_space<vmem>>, %arg5: memref<1x8x128xf32, #tpu.memory_space<vmem>>, %arg6: memref<128x128xbf16, #tpu.memory_space<vmem>>) attributes {dimension_semantics = [#tpu.dimension_semantics<parallel>, #tpu.dimension_semantics<parallel>], iteration_bounds = array<i64: 2, 1>, scalar_prefetch = 0 : i64, scratch_operands = 1 : i64, tpu.core_type = #tpu.core_type<tc>, window_params = [{transform_indices = @transform_0, window_bounds = array<i64: 1, 4, 8, 256>}, {transform_indices = @transform_1, window_bounds = array<i64: 8, 128>}, {pipeline_mode = #tpu.pipeline_mode<synchronous>, transform_indices = @transform_2, window_bounds = array<i64: 1, 128>}, {transform_indices = @transform_3, window_bounds = array<i64: 1, 8, 128>}]} {
    %c0 = arith.constant 0 : index
    %c0_0 = arith.constant 0 : index
    %c0_1 = arith.constant 0 : index
    %c0_2 = arith.constant 0 : index
    %0 = vector.load %arg2[%c0, %c0_0, %c0_1, %c0_2] : memref<1x4x8x256xbf16, #tpu.memory_space<vmem>>, vector<1x1x8x128xbf16>
    %1 = vector.shape_cast %0 : vector<1x1x8x128xbf16> to vector<8x128xbf16>
    %c0_3 = arith.constant 0 : index
    %c0_4 = arith.constant 0 : index
    %2 = vector.load %arg6[%c0_3, %c0_4] : memref<128x128xbf16, #tpu.memory_space<vmem>>, vector<8x128xbf16>
    tpu.vector_store %arg6[%c0_3, %c0_4], %1 {strides = array<i32>} : memref<128x128xbf16, #tpu.memory_space<vmem>>, vector<8x128xbf16>,
    %c0_5 = arith.constant 0 : index
    %c0_6 = arith.constant 0 : index
    %c0_7 = arith.constant 0 : index
    %c1 = arith.constant 1 : index
    %3 = vector.load %arg2[%c0_5, %c0_6, %c0_7, %c1] : memref<1x4x8x256xbf16, #tpu.memory_space<vmem>>, vector<1x1x8x128xbf16>
    %4 = vector.shape_cast %3 : vector<1x1x8x128xbf16> to vector<8x128xbf16>
    %c8 = arith.constant 8 : index
    %c0_8 = arith.constant 0 : index
    %5 = vector.load %arg6[%c8, %c0_8] : memref<128x128xbf16, #tpu.memory_space<vmem>>, vector<8x128xbf16>
    tpu.vector_store %arg6[%c8, %c0_8], %4 {strides = array<i32>} : memref<128x128xbf16, #tpu.memory_space<vmem>>, vector<8x128xbf16>,
    %c0_9 = arith.constant 0 : index
    %c0_10 = arith.constant 0 : index
    %c0_11 = arith.constant 0 : index
    %c9 = arith.constant 9 : index
    %6 = vector.load %arg2[%c0_9, %c0_10, %c0_11, %c9] : memref<1x4x8x256xbf16, #tpu.memory_space<vmem>>, vector<1x1x8x128xbf16>
    %7 = vector.shape_cast %6 : vector<1x1x8x128xbf16> to vector<8x128xbf16>
    %c16 = arith.constant 16 : index
    %c0_12 = arith.constant 0 : index
    %8 = vector.load %arg6[%c16, %c0_12] : memref<128x128xbf16, #tpu.memory_space<vmem>>, vector<8x128xbf16>
    tpu.vector_store %arg6[%c16, %c0_12], %7 {strides = array<i32>} : memref<128x128xbf16, #tpu.memory_space<vmem>>, vector<8x128xbf16>,
    %c0_13 = arith.constant 0 : index
    %c0_14 = arith.constant 0 : index
    %c0_15 = arith.constant 0 : index
    %c10 = arith.constant 10 : index
    %9 = vector.load %arg2[%c0_13, %c0_14, %c0_15, %c10] : memref<1x4x8x256xbf16, #tpu.memory_space<vmem>>, vector<1x1x8x128xbf16>
    %10 = vector.shape_cast %9 : vector<1x1x8x128xbf16> to vector<8x128xbf16>
    %c24 = arith.constant 24 : index
    %c0_16 = arith.constant 0 : index
    %11 = vector.load %arg6[%c24, %c0_16] : memref<128x128xbf16, #tpu.memory_space<vmem>>, vector<8x128xbf16>
    tpu.vector_store %arg6[%c24, %c0_16], %10 {strides = array<i32>} : memref<128x128xbf16, #tpu.memory_space<vmem>>, vector<8x128xbf16>,
    %c0_17 = arith.constant 0 : index
    %c1_18 = arith.constant 1 : index
    %c0_19 = arith.constant 0 : index
    %c0_20 = arith.constant 0 : index
    %12 = vector.load %arg2[%c0_17, %c1_18, %c0_19, %c0_20] : memref<1x4x8x256xbf16, #tpu.memory_space<vmem>>, vector<1x1x8x128xbf16>
    %13 = vector.shape_cast %12 : vector<1x1x8x128xbf16> to vector<8x128xbf16>
    %c32 = arith.constant 32 : index
    %c0_21 = arith.constant 0 : index
    %14 = vector.load %arg6[%c32, %c0_21] : memref<128x128xbf16, #tpu.memory_space<vmem>>, vector<8x128xbf16>
    tpu.vector_store %arg6[%c32, %c0_21], %13 {strides = array<i32>} : memref<128x128xbf16, #tpu.memory_space<vmem>>, vector<8x128xbf16>,
    %c0_22 = arith.constant 0 : index
    %c1_23 = arith.constant 1 : index
    %c0_24 = arith.constant 0 : index
    %c1_25 = arith.constant 1 : index
    %15 = vector.load %arg2[%c0_22, %c1_23, %c0_24, %c1_25] : memref<1x4x8x256xbf16, #tpu.memory_space<vmem>>, vector<1x1x8x128xbf16>
    %16 = vector.shape_cast %15 : vector<1x1x8x128xbf16> to vector<8x128xbf16>
    %c40 = arith.constant 40 : index
    %c0_26 = arith.constant 0 : index
    %17 = vector.load %arg6[%c40, %c0_26] : memref<128x128xbf16, #tpu.memory_space<vmem>>, vector<8x128xbf16>
    tpu.vector_store %arg6[%c40, %c0_26], %16 {strides = array<i32>} : memref<128x128xbf16, #tpu.memory_space<vmem>>, vector<8x128xbf16>,
    %c0_27 = arith.constant 0 : index
    %c1_28 = arith.constant 1 : index
    %c0_29 = arith.constant 0 : index
    %c9_30 = arith.constant 9 : index
    %18 = vector.load %arg2[%c0_27, %c1_28, %c0_29, %c9_30] : memref<1x4x8x256xbf16, #tpu.memory_space<vmem>>, vector<1x1x8x128xbf16>
    %19 = vector.shape_cast %18 : vector<1x1x8x128xbf16> to vector<8x128xbf16>
    %c48 = arith.constant 48 : index
    %c0_31 = arith.constant 0 : index
    %20 = vector.load %arg6[%c48, %c0_31] : memref<128x128xbf16, #tpu.memory_space<vmem>>, vector<8x128xbf16>
    tpu.vector_store %arg6[%c48, %c0_31], %19 {strides = array<i32>} : memref<128x128xbf16, #tpu.memory_space<vmem>>, vector<8x128xbf16>,
    %c0_32 = arith.constant 0 : index
    %c1_33 = arith.constant 1 : index
    %c0_34 = arith.constant 0 : index
    %c10_35 = arith.constant 10 : index
    %21 = vector.load %arg2[%c0_32, %c1_33, %c0_34, %c10_35] : memref<1x4x8x256xbf16, #tpu.memory_space<vmem>>, vector<1x1x8x128xbf16>
    %22 = vector.shape_cast %21 : vector<1x1x8x128xbf16> to vector<8x128xbf16>
    %c56 = arith.constant 56 : index
    %c0_36 = arith.constant 0 : index
    %23 = vector.load %arg6[%c56, %c0_36] : memref<128x128xbf16, #tpu.memory_space<vmem>>, vector<8x128xbf16>
    tpu.vector_store %arg6[%c56, %c0_36], %22 {strides = array<i32>} : memref<128x128xbf16, #tpu.memory_space<vmem>>, vector<8x128xbf16>,
    %c0_37 = arith.constant 0 : index
    %c2 = arith.constant 2 : index
    %c0_38 = arith.constant 0 : index
    %c0_39 = arith.constant 0 : index
    %24 = vector.load %arg2[%c0_37, %c2, %c0_38, %c0_39] : memref<1x4x8x256xbf16, #tpu.memory_space<vmem>>, vector<1x1x8x128xbf16>
    %25 = vector.shape_cast %24 : vector<1x1x8x128xbf16> to vector<8x128xbf16>
    %c64 = arith.constant 64 : index
    %c0_40 = arith.constant 0 : index
    %26 = vector.load %arg6[%c64, %c0_40] : memref<128x128xbf16, #tpu.memory_space<vmem>>, vector<8x128xbf16>
    tpu.vector_store %arg6[%c64, %c0_40], %25 {strides = array<i32>} : memref<128x128xbf16, #tpu.memory_space<vmem>>, vector<8x128xbf16>,
    %c0_41 = arith.constant 0 : index
    %c2_42 = arith.constant 2 : index
    %c0_43 = arith.constant 0 : index
    %c1_44 = arith.constant 1 : index
    %27 = vector.load %arg2[%c0_41, %c2_42, %c0_43, %c1_44] : memref<1x4x8x256xbf16, #tpu.memory_space<vmem>>, vector<1x1x8x128xbf16>
    %28 = vector.shape_cast %27 : vector<1x1x8x128xbf16> to vector<8x128xbf16>
    %c72 = arith.constant 72 : index
    %c0_45 = arith.constant 0 : index
    %29 = vector.load %arg6[%c72, %c0_45] : memref<128x128xbf16, #tpu.memory_space<vmem>>, vector<8x128xbf16>
    tpu.vector_store %arg6[%c72, %c0_45], %28 {strides = array<i32>} : memref<128x128xbf16, #tpu.memory_space<vmem>>, vector<8x128xbf16>,
    %c0_46 = arith.constant 0 : index
    %c2_47 = arith.constant 2 : index
    %c0_48 = arith.constant 0 : index
    %c9_49 = arith.constant 9 : index
    %30 = vector.load %arg2[%c0_46, %c2_47, %c0_48, %c9_49] : memref<1x4x8x256xbf16, #tpu.memory_space<vmem>>, vector<1x1x8x128xbf16>
    %31 = vector.shape_cast %30 : vector<1x1x8x128xbf16> to vector<8x128xbf16>
    %c80 = arith.constant 80 : index
    %c0_50 = arith.constant 0 : index
    %32 = vector.load %arg6[%c80, %c0_50] : memref<128x128xbf16, #tpu.memory_space<vmem>>, vector<8x128xbf16>
    tpu.vector_store %arg6[%c80, %c0_50], %31 {strides = array<i32>} : memref<128x128xbf16, #tpu.memory_space<vmem>>, vector<8x128xbf16>,
    %c0_51 = arith.constant 0 : index
    %c2_52 = arith.constant 2 : index
    %c0_53 = arith.constant 0 : index
    %c10_54 = arith.constant 10 : index
    %33 = vector.load %arg2[%c0_51, %c2_52, %c0_53, %c10_54] : memref<1x4x8x256xbf16, #tpu.memory_space<vmem>>, vector<1x1x8x128xbf16>
    %34 = vector.shape_cast %33 : vector<1x1x8x128xbf16> to vector<8x128xbf16>
    %c88 = arith.constant 88 : index
    %c0_55 = arith.constant 0 : index
    %35 = vector.load %arg6[%c88, %c0_55] : memref<128x128xbf16, #tpu.memory_space<vmem>>, vector<8x128xbf16>
    tpu.vector_store %arg6[%c88, %c0_55], %34 {strides = array<i32>} : memref<128x128xbf16, #tpu.memory_space<vmem>>, vector<8x128xbf16>,
    %c0_56 = arith.constant 0 : index
    %c3 = arith.constant 3 : index
    %c0_57 = arith.constant 0 : index
    %c0_58 = arith.constant 0 : index
    %36 = vector.load %arg2[%c0_56, %c3, %c0_57, %c0_58] : memref<1x4x8x256xbf16, #tpu.memory_space<vmem>>, vector<1x1x8x128xbf16>
    %37 = vector.shape_cast %36 : vector<1x1x8x128xbf16> to vector<8x128xbf16>
    %c96 = arith.constant 96 : index
    %c0_59 = arith.constant 0 : index
    %38 = vector.load %arg6[%c96, %c0_59] : memref<128x128xbf16, #tpu.memory_space<vmem>>, vector<8x128xbf16>
    tpu.vector_store %arg6[%c96, %c0_59], %37 {strides = array<i32>} : memref<128x128xbf16, #tpu.memory_space<vmem>>, vector<8x128xbf16>,
    %c0_60 = arith.constant 0 : index
    %c3_61 = arith.constant 3 : index
    %c0_62 = arith.constant 0 : index
    %c1_63 = arith.constant 1 : index
    %39 = vector.load %arg2[%c0_60, %c3_61, %c0_62, %c1_63] : memref<1x4x8x256xbf16, #tpu.memory_space<vmem>>, vector<1x1x8x128xbf16>
    %40 = vector.shape_cast %39 : vector<1x1x8x128xbf16> to vector<8x128xbf16>
    %c104 = arith.constant 104 : index
    %c0_64 = arith.constant 0 : index
    %41 = vector.load %arg6[%c104, %c0_64] : memref<128x128xbf16, #tpu.memory_space<vmem>>, vector<8x128xbf16>
    tpu.vector_store %arg6[%c104, %c0_64], %40 {strides = array<i32>} : memref<128x128xbf16, #tpu.memory_space<vmem>>, vector<8x128xbf16>,
    %c0_65 = arith.constant 0 : index
    %c3_66 = arith.constant 3 : index
    %c0_67 = arith.constant 0 : index
    %c9_68 = arith.constant 9 : index
    %42 = vector.load %arg2[%c0_65, %c3_66, %c0_67, %c9_68] : memref<1x4x8x256xbf16, #tpu.memory_space<vmem>>, vector<1x1x8x128xbf16>
    %43 = vector.shape_cast %42 : vector<1x1x8x128xbf16> to vector<8x128xbf16>
    %c112 = arith.constant 112 : index
    %c0_69 = arith.constant 0 : index
    %44 = vector.load %arg6[%c112, %c0_69] : memref<128x128xbf16, #tpu.memory_space<vmem>>, vector<8x128xbf16>
    tpu.vector_store %arg6[%c112, %c0_69], %43 {strides = array<i32>} : memref<128x128xbf16, #tpu.memory_space<vmem>>, vector<8x128xbf16>,
    %c0_70 = arith.constant 0 : index
    %c3_71 = arith.constant 3 : index
    %c0_72 = arith.constant 0 : index
    %c10_73 = arith.constant 10 : index
    %45 = vector.load %arg2[%c0_70, %c3_71, %c0_72, %c10_73] : memref<1x4x8x256xbf16, #tpu.memory_space<vmem>>, vector<1x1x8x128xbf16>
    %46 = vector.shape_cast %45 : vector<1x1x8x128xbf16> to vector<8x128xbf16>
    %c120 = arith.constant 120 : index
    %c0_74 = arith.constant 0 : index
    %47 = vector.load %arg6[%c120, %c0_74] : memref<128x128xbf16, #tpu.memory_space<vmem>>, vector<8x128xbf16>
    tpu.vector_store %arg6[%c120, %c0_74], %46 {strides = array<i32>} : memref<128x128xbf16, #tpu.memory_space<vmem>>, vector<8x128xbf16>,
    %c0_75 = arith.constant 0 : index
    %c0_76 = arith.constant 0 : index
    %48 = vector.load %arg3[%c0_75, %c0_76] : memref<8x128xbf16, #tpu.memory_space<vmem>>, vector<8x128xbf16>
    %c0_77 = arith.constant 0 : index
    %c0_78 = arith.constant 0 : index
    %49 = vector.load %arg6[%c0_77, %c0_78] : memref<128x128xbf16, #tpu.memory_space<vmem>>, vector<128x128xbf16>
    %cst = arith.constant dense<0.000000e+00> : vector<8x128xf32>
    %50 = tpu.matmul %48, %49, %cst {dimension_numbers = #tpu.dot_dimension_numbers<[1], [0], [0], [1], [0, 0, 1, 1], [], []>} : vector<8x128xbf16>, vector<128x128xbf16>, vector<8x128xf32> -> vector<8x128xf32>
    %c0_79 = arith.constant 0 : index
    %c0_80 = arith.constant 0 : index
    %51 = vector.load %arg4[%c0_79, %c0_80] : memref<1x128xf32, #tpu.memory_space<vmem>>, vector<1x128xf32>
    %52 = vector.shape_cast %51 : vector<1x128xf32> to vector<1x128xf32>
    %53 = vector.broadcast %52 : vector<1x128xf32> to vector<8x128xf32>
    %54 = arith.mulf %50, %53 : vector<8x128xf32>
    %cst_81 = arith.constant dense<0.000000e+00> : vector<8xf32>
    %55 = vector.multi_reduction <add>, %54, %cst_81 [1] : vector<8x128xf32> to vector<8xf32>
    %56 = vector.shape_cast %55 : vector<8xf32> to vector<8x1xf32>
    %cst_82 = arith.constant 1.562500e-02 : f32
    %57 = vector.broadcast %cst_82 : f32 to vector<8x1xf32>
    %58 = arith.mulf %56, %57 : vector<8x1xf32>
    %59 = vector.broadcast %58 : vector<8x1xf32> to vector<8x128xf32>
    %60 = arith.subf %50, %59 : vector<8x128xf32>
    %61 = arith.mulf %60, %53 : vector<8x128xf32>
    %62 = arith.mulf %61, %61 : vector<8x128xf32>
    %cst_83 = arith.constant dense<0.000000e+00> : vector<8xf32>
    %63 = vector.multi_reduction <add>, %62, %cst_83 [1] : vector<8x128xf32> to vector<8xf32>
    %64 = vector.shape_cast %63 : vector<8xf32> to vector<8x1xf32>
    %cst_84 = arith.constant 1.562500e-02 : f32
    %65 = vector.broadcast %cst_84 : f32 to vector<8x1xf32>
    %66 = arith.mulf %64, %65 : vector<8x1xf32>
    %cst_85 = arith.constant 9.99999974E-6 : f32
    %67 = vector.broadcast %cst_85 : f32 to vector<8x1xf32>
    %68 = arith.addf %66, %67 : vector<8x1xf32>
    %69 = math.rsqrt %68 : vector<8x1xf32>
    %70 = vector.broadcast %69 : vector<8x1xf32> to vector<8x128xf32>
    %71 = arith.mulf %60, %70 : vector<8x128xf32>
    %cst_86 = arith.constant 0.000000e+00 : f32
    %72 = vector.broadcast %cst_86 : f32 to vector<8x128xf32>
    %73 = arith.cmpf oge, %71, %72 : vector<8x128xf32>
    %cst_87 = arith.constant 2.000000e-01 : f32
    %74 = vector.broadcast %cst_87 : f32 to vector<8x128xf32>
    %75 = arith.mulf %74, %71 : vector<8x128xf32>
    %76 = arith.select %73, %71, %75 : vector<8x128xi1>, vector<8x128xf32>
    %77 = vector.extract_strided_slice %76 {offsets = [0, 0], sizes = [8, 8], strides = [1, 1]} : vector<8x128xf32> to vector<8x8xf32>
    %c0_88 = arith.constant 0 : index
    %c0_89 = arith.constant 0 : index
    %c0_90 = arith.constant 0 : index
    %78 = vector.load %arg5[%c0_88, %c0_89, %c0_90] : memref<1x8x128xf32, #tpu.memory_space<vmem>>, vector<1x8x8xf32>
    %79 = vector.shape_cast %78 : vector<1x8x8xf32> to vector<8x8xf32>
    %80 = vector.shape_cast %77 : vector<8x8xf32> to vector<1x8x8xf32>
    tpu.vector_store %arg5[%c0_88, %c0_89, %c0_90], %80 {strides = array<i32>} : memref<1x8x128xf32, #tpu.memory_space<vmem>>, vector<1x8x8xf32>,
    %81 = vector.extract_strided_slice %76 {offsets = [0, 9], sizes = [8, 8], strides = [1, 1]} : vector<8x128xf32> to vector<8x8xf32>
    %c0_91 = arith.constant 0 : index
    %c0_92 = arith.constant 0 : index
    %c8_93 = arith.constant 8 : index
    %82 = vector.load %arg5[%c0_91, %c0_92, %c8_93] : memref<1x8x128xf32, #tpu.memory_space<vmem>>, vector<1x8x8xf32>
    %83 = vector.shape_cast %82 : vector<1x8x8xf32> to vector<8x8xf32>
    %84 = vector.shape_cast %81 : vector<8x8xf32> to vector<1x8x8xf32>
    tpu.vector_store %arg5[%c0_91, %c0_92, %c8_93], %84 {strides = array<i32>} : memref<1x8x128xf32, #tpu.memory_space<vmem>>, vector<1x8x8xf32>,
    %85 = vector.extract_strided_slice %76 {offsets = [0, 18], sizes = [8, 8], strides = [1, 1]} : vector<8x128xf32> to vector<8x8xf32>
    %c0_94 = arith.constant 0 : index
    %c0_95 = arith.constant 0 : index
    %c16_96 = arith.constant 16 : index
    %86 = vector.load %arg5[%c0_94, %c0_95, %c16_96] : memref<1x8x128xf32, #tpu.memory_space<vmem>>, vector<1x8x8xf32>
    %87 = vector.shape_cast %86 : vector<1x8x8xf32> to vector<8x8xf32>
    %88 = vector.shape_cast %85 : vector<8x8xf32> to vector<1x8x8xf32>
    tpu.vector_store %arg5[%c0_94, %c0_95, %c16_96], %88 {strides = array<i32>} : memref<1x8x128xf32, #tpu.memory_space<vmem>>, vector<1x8x8xf32>,
    %89 = vector.extract_strided_slice %76 {offsets = [0, 27], sizes = [8, 8], strides = [1, 1]} : vector<8x128xf32> to vector<8x8xf32>
    %c0_97 = arith.constant 0 : index
    %c0_98 = arith.constant 0 : index
    %c24_99 = arith.constant 24 : index
    %90 = vector.load %arg5[%c0_97, %c0_98, %c24_99] : memref<1x8x128xf32, #tpu.memory_space<vmem>>, vector<1x8x8xf32>
    %91 = vector.shape_cast %90 : vector<1x8x8xf32> to vector<8x8xf32>
    %92 = vector.shape_cast %89 : vector<8x8xf32> to vector<1x8x8xf32>
    tpu.vector_store %arg5[%c0_97, %c0_98, %c24_99], %92 {strides = array<i32>} : memref<1x8x128xf32, #tpu.memory_space<vmem>>, vector<1x8x8xf32>,
    %93 = vector.extract_strided_slice %76 {offsets = [0, 36], sizes = [8, 8], strides = [1, 1]} : vector<8x128xf32> to vector<8x8xf32>
    %c0_100 = arith.constant 0 : index
    %c0_101 = arith.constant 0 : index
    %c32_102 = arith.constant 32 : index
    %94 = vector.load %arg5[%c0_100, %c0_101, %c32_102] : memref<1x8x128xf32, #tpu.memory_space<vmem>>, vector<1x8x8xf32>
    %95 = vector.shape_cast %94 : vector<1x8x8xf32> to vector<8x8xf32>
    %96 = vector.shape_cast %93 : vector<8x8xf32> to vector<1x8x8xf32>
    tpu.vector_store %arg5[%c0_100, %c0_101, %c32_102], %96 {strides = array<i32>} : memref<1x8x128xf32, #tpu.memory_space<vmem>>, vector<1x8x8xf32>,
    %97 = vector.extract_strided_slice %76 {offsets = [0, 45], sizes = [8, 8], strides = [1, 1]} : vector<8x128xf32> to vector<8x8xf32>
    %c0_103 = arith.constant 0 : index
    %c0_104 = arith.constant 0 : index
    %c40_105 = arith.constant 40 : index
    %98 = vector.load %arg5[%c0_103, %c0_104, %c40_105] : memref<1x8x128xf32, #tpu.memory_space<vmem>>, vector<1x8x8xf32>
    %99 = vector.shape_cast %98 : vector<1x8x8xf32> to vector<8x8xf32>
    %100 = vector.shape_cast %97 : vector<8x8xf32> to vector<1x8x8xf32>
    tpu.vector_store %arg5[%c0_103, %c0_104, %c40_105], %100 {strides = array<i32>} : memref<1x8x128xf32, #tpu.memory_space<vmem>>, vector<1x8x8xf32>,
    %101 = vector.extract_strided_slice %76 {offsets = [0, 54], sizes = [8, 8], strides = [1, 1]} : vector<8x128xf32> to vector<8x8xf32>
    %c0_106 = arith.constant 0 : index
    %c0_107 = arith.constant 0 : index
    %c48_108 = arith.constant 48 : index
    %102 = vector.load %arg5[%c0_106, %c0_107, %c48_108] : memref<1x8x128xf32, #tpu.memory_space<vmem>>, vector<1x8x8xf32>
    %103 = vector.shape_cast %102 : vector<1x8x8xf32> to vector<8x8xf32>
    %104 = vector.shape_cast %101 : vector<8x8xf32> to vector<1x8x8xf32>
    tpu.vector_store %arg5[%c0_106, %c0_107, %c48_108], %104 {strides = array<i32>} : memref<1x8x128xf32, #tpu.memory_space<vmem>>, vector<1x8x8xf32>,
    %105 = vector.extract_strided_slice %76 {offsets = [0, 63], sizes = [8, 8], strides = [1, 1]} : vector<8x128xf32> to vector<8x8xf32>
    %c0_109 = arith.constant 0 : index
    %c0_110 = arith.constant 0 : index
    %c56_111 = arith.constant 56 : index
    %106 = vector.load %arg5[%c0_109, %c0_110, %c56_111] : memref<1x8x128xf32, #tpu.memory_space<vmem>>, vector<1x8x8xf32>
    %107 = vector.shape_cast %106 : vector<1x8x8xf32> to vector<8x8xf32>
    %108 = vector.shape_cast %105 : vector<8x8xf32> to vector<1x8x8xf32>
    tpu.vector_store %arg5[%c0_109, %c0_110, %c56_111], %108 {strides = array<i32>} : memref<1x8x128xf32, #tpu.memory_space<vmem>>, vector<1x8x8xf32>,
    %cst_112 = arith.constant 0.000000e+00 : f32
    %109 = vector.broadcast %cst_112 : f32 to vector<8x64xf32>
    %c0_113 = arith.constant 0 : index
    %c0_114 = arith.constant 0 : index
    %c64_115 = arith.constant 64 : index
    %110 = vector.load %arg5[%c0_113, %c0_114, %c64_115] : memref<1x8x128xf32, #tpu.memory_space<vmem>>, vector<1x8x64xf32>
    %111 = vector.shape_cast %110 : vector<1x8x64xf32> to vector<8x64xf32>
    %112 = vector.shape_cast %109 : vector<8x64xf32> to vector<1x8x64xf32>
    tpu.vector_store %arg5[%c0_113, %c0_114, %c64_115], %112 {strides = array<i32>} : memref<1x8x128xf32, #tpu.memory_space<vmem>>, vector<1x8x64xf32>,
    return
  }
  func.func @transform_0(%arg0: i32, %arg1: i32) -> (i32, i32, i32, i32) {
    %c0_i32 = arith.constant 0 : i32
    %c0_i32_0 = arith.constant 0 : i32
    %c0_i32_1 = arith.constant 0 : i32
    %c0_i32_2 = arith.constant 0 : i32
    return %arg0, %c0_i32, %c0_i32_0, %c0_i32_1 : i32, i32, i32, i32
  }
  func.func @transform_1(%arg0: i32, %arg1: i32) -> (i32, i32) {
    %c0_i32 = arith.constant 0 : i32
    %c0_i32_0 = arith.constant 0 : i32
    return %arg1, %c0_i32 : i32, i32
  }
  func.func @transform_2(%arg0: i32, %arg1: i32) -> (i32, i32) {
    %c0_i32 = arith.constant 0 : i32
    %c0_i32_0 = arith.constant 0 : i32
    %c0_i32_1 = arith.constant 0 : i32
    return %c0_i32, %c0_i32_0 : i32, i32
  }
  func.func @transform_3(%arg0: i32, %arg1: i32) -> (i32, i32, i32) {
    %c0_i32 = arith.constant 0 : i32
    %c0_i32_0 = arith.constant 0 : i32
    return %arg0, %arg1, %c0_i32 : i32, i32, i32
  }
}

</mosaic_0001>

<llo_original>
// kernel: unet_down_2d_bayesian.1
$region0: #{unet_down_2d_bayesian.1}
  #allocation0 [shape = 'u32[]', space=smem, size = 0x4, offset = 0x4, fixed_abs, tag = 'smem constant byte address 0x4 - core index']
  #allocation1 [shape = 'u32[72,128]{1,0:T(1,128)}', space=vmem, size = 0x9000, scoped, tag = 'internal scratch']
  #allocation2 [shape = 'bf16[128,128]{1,0:T(8,128)(2,1)}', space=vmem, size = 0x8000, scoped, tag = 'scratch operand']
  %s0 = inlined_call_operand.vmem [shape: bf16[2,4,8,256], index: 0, kind: input, shape index: {}]
  %s1 = inlined_call_operand.vmem [shape: bf16[8,128], index: 1, kind: input, shape index: {}]
  %s2 = inlined_call_operand.vmem [shape: f32[1,128], index: 2, kind: input, shape index: {}]
  %s3 = inlined_call_operand.vmem [shape: f32[2,8,128], index: 3, kind: output, shape index: {}]
  %s4 = sld [smem:[#allocation0]]
  $region45: #{unet_down_2d_bayesian.1} parent=0
    _
  %s6 = ssub.s32 1, %s4
  %s7 = scalar_select 0, %s6, %s4
  loop: start=0, step=1, limit=4
  $region2: #{unet_down_2d_bayesian.1} parent=0 // loop_pre_header
    _
  $region3: #{unet_down_2d_bayesian.1} parent=0 // loop_header
    %s9 = sphi 0, %s13
    %p10 = scmp.ge.s32.totalorder %s9, 4
    %s16 = sphi 0, %s28
    %s17 = sphi 0, %s24
    %s18 = sphi 0, %s16
    %s19 = sphi 0, %s17
    %s20 = sphi 0, %s18
    %s21 = sphi 0, %s19
    %s31 = sphi 0, %s33
    %s34 = sphi 0, %s31
    %s35 = sphi 0, %s34
    %s51 = sphi 0, %s35
    %s57 = sphi 0, %s59
    %s60 = sphi 0, %s57
    %s61 = sphi 0, %s60
    %s77 = sphi 0, %s61
    %s81 = sphi 0, %s81
    %s83 = sphi 0, %s81
    %s84 = sphi 0, %s83
    %s98 = sphi 0, %s84
    %s106 = sphi 0, %s108
    %s109 = sphi 0, %s106
    %s110 = sphi 0, %s109
    %s126 = sphi 0, %s110
  $region4: #{unet_down_2d_bayesian.1} parent=0 // loop_header_branch
    %12 = sbr.rel (%p10) target = $region8
  $region5: #{unet_down_2d_bayesian.1} parent=0 // loop_body
    %s14 = ssub.s32 %s9, 1
    %s15 = ssub.s32 %s9, 2
    %s22 = sadd.s32 1, %s17
    %p23 = scmp.ge.s32.totalorder %s22, 1
    %s24 = scalar_select %p23, 0, %s22
    %s25 = sadd.s32 1, %s16
    %s26 = scalar_select %p23, %s25, %s16
    %p27 = scmp.ge.s32.totalorder %s26, 2
    %s28 = scalar_select %p27, 0, %s26
    %s29 = ssub.s32 %s16, %s28
    %p30 = scmp.eq.s32.totalorder %s29, 0
    %s32 = sadd.s32 %s31, 1
    %s33 = scalar_select %p30, %s31, %s32
    %p36 = pneg %p30
    %p37 = scmp.eq.s32.totalorder %s9, 1
    %p38 = por %p36, %p37
    %p39 = scmp.ne.s32.totalorder %s31, %s34
    %p40 = scmp.eq.s32.totalorder %s9, 0
    %p41 = por %p39, %p40
    %p42 = scmp.ne.s32.totalorder %s31, %s34
    %p43 = scmp.eq.s32.totalorder %s14, 1
    %p44 = por %p42, %p43
    %p45 = scmp.ne.s32.totalorder %s34, %s35
    %p46 = scmp.eq.s32.totalorder %s14, 0
    %p47 = por %p45, %p46
    %p48 = scmp.ne.s32.totalorder %s34, %s35
    %p49 = scmp.eq.s32.totalorder %s15, 1
    %p50 = por %p48, %p49
    %p52 = scmp.ne.s32.totalorder %s35, %s51
    %p53 = scmp.eq.s32.totalorder %s15, 0
    %p54 = por %p52, %p53
    %s55 = ssub.s32 %s17, %s24
    %p56 = scmp.eq.s32.totalorder %s55, 0
    %s58 = sadd.s32 %s57, 1
    %s59 = scalar_select %p56, %s57, %s58
    %p62 = pneg %p56
    %p63 = scmp.eq.s32.totalorder %s9, 1
    %p64 = por %p62, %p63
    %p65 = scmp.ne.s32.totalorder %s57, %s60
    %p66 = scmp.eq.s32.totalorder %s9, 0
    %p67 = por %p65, %p66
    %p68 = scmp.ne.s32.totalorder %s57, %s60
    %p69 = scmp.eq.s32.totalorder %s14, 1
    %p70 = por %p68, %p69
    %p71 = scmp.ne.s32.totalorder %s60, %s61
    %p72 = scmp.eq.s32.totalorder %s14, 0
    %p73 = por %p71, %p72
    %p74 = scmp.ne.s32.totalorder %s60, %s61
    %p75 = scmp.eq.s32.totalorder %s15, 1
    %p76 = por %p74, %p75
    %p78 = scmp.ne.s32.totalorder %s61, %s77
    %p79 = scmp.eq.s32.totalorder %s15, 0
    %p80 = por %p78, %p79
    %s82 = sadd.s32 %s81, 1
    %p85 = scmp.eq.s32.totalorder %s9, 1
    %p86 = scmp.ne.s32.totalorder %s81, %s83
    %p87 = scmp.eq.s32.totalorder %s9, 0
    %p88 = por %p86, %p87
    %p89 = scmp.ne.s32.totalorder %s81, %s83
    %p90 = scmp.eq.s32.totalorder %s14, 1
    %p91 = por %p89, %p90
    %p92 = scmp.ne.s32.totalorder %s83, %s84
    %p93 = scmp.eq.s32.totalorder %s14, 0
    %p94 = por %p92, %p93
    %p95 = scmp.ne.s32.totalorder %s83, %s84
    %p96 = scmp.eq.s32.totalorder %s15, 1
    %p97 = por %p95, %p96
    %p99 = scmp.ne.s32.totalorder %s84, %s98
    %p100 = scmp.eq.s32.totalorder %s15, 0
    %p101 = por %p99, %p100
    %s102 = ssub.s32 %s16, %s28
    %s103 = ssub.s32 %s17, %s24
    %s104 = sor.u32 %s102, %s103
    %p105 = scmp.eq.s32.totalorder %s104, 0
    %s107 = sadd.s32 %s106, 1
    %s108 = scalar_select %p105, %s106, %s107
    %p111 = pneg %p105
    %p112 = scmp.eq.s32.totalorder %s9, 1
    %p113 = por %p111, %p112
    %p114 = scmp.ne.s32.totalorder %s106, %s109
    %p115 = scmp.eq.s32.totalorder %s9, 0
    %p116 = por %p114, %p115
    %p117 = scmp.ne.s32.totalorder %s106, %s109
    %p118 = scmp.eq.s32.totalorder %s14, 1
    %p119 = por %p117, %p118
    %p120 = scmp.ne.s32.totalorder %s109, %s110
    %p121 = scmp.eq.s32.totalorder %s14, 0
    %p122 = por %p120, %p121
    %p123 = scmp.ne.s32.totalorder %s109, %s110
    %p124 = scmp.eq.s32.totalorder %s15, 1
    %p125 = por %p123, %p124
    %p127 = scmp.ne.s32.totalorder %s110, %s126
    %p128 = scmp.eq.s32.totalorder %s15, 0
    %p129 = por %p127, %p128
    %p130 = scmp.le.s32.totalorder 1, %s9
    %p131 = scmp.lt.s32.totalorder %s9, 3
    %p132 = pnand %p130, %p131
    %p133 = pneg %p132
    // Predicated region
    $region9: #{unet_down_2d_bayesian.1} parent=5 // pred_check
      _
    $region10: #{unet_down_2d_bayesian.1} parent=5 // pred_check_branch
      %135 = sbr.rel (%p132) target = $region12
    $region11: #{unet_down_2d_bayesian.1} parent=5 // pred_region
      %s136 = ssub.s32 %s9, 1
      // Predicated region
      $region13: #{unet_down_2d_bayesian.1} parent=11 // pred_check
        %p137 = pneg %p73
      $region14: #{unet_down_2d_bayesian.1} parent=11 // pred_check_branch
        %139 = sbr.rel (%p137) target = $region16
      $region15: #{unet_down_2d_bayesian.1} parent=11 // pred_region
        %p140 = scmp.lt.s32.totalorder %s19, 0
        %s141 = scalar_select %p140, %s19, 0
        %s142 = smul.addr %s141, 4
        %s143 = scalar_lea.vmem %s1, %s142
      $region16: #{unet_down_2d_bayesian.1} parent=11 // pred_fallthru
        _
      // Predicated region
      $region17: #{unet_down_2d_bayesian.1} parent=11 // pred_check
        %p144 = pneg %p94
      $region18: #{unet_down_2d_bayesian.1} parent=11 // pred_check_branch
        %146 = sbr.rel (%p144) target = $region20
      $region19: #{unet_down_2d_bayesian.1} parent=11 // pred_region
        _
      $region20: #{unet_down_2d_bayesian.1} parent=11 // pred_fallthru
        _
    $region12: #{unet_down_2d_bayesian.1} parent=5 // pred_fallthru
      _
    %p147 = scmp.lt.s32.totalorder %s9, 2
    // Predicated region
    $region21: #{unet_down_2d_bayesian.1} parent=5 // pred_check
      %p148 = pneg %p147
    $region22: #{unet_down_2d_bayesian.1} parent=5 // pred_check_branch
      %150 = sbr.rel (%p148) target = $region24
    $region23: #{unet_down_2d_bayesian.1} parent=5 // pred_region
      // Predicated region
      $region25: #{unet_down_2d_bayesian.1} parent=23 // pred_check
        %p151 = pneg %p41
      $region26: #{unet_down_2d_bayesian.1} parent=23 // pred_check_branch
        %153 = sbr.rel (%p151) target = $region28
      $region27: #{unet_down_2d_bayesian.1} parent=23 // pred_region
        %p154 = scmp.lt.s32.totalorder %s16, 1
        %s155 = scalar_select %p154, %s16, 1
        %s156 = smul.addr %s155, 8
        %s157 = smul.addr %s156, 4
        %s158 = scalar_lea.vmem %s0, %s157
      $region28: #{unet_down_2d_bayesian.1} parent=23 // pred_fallthru
        _
    $region24: #{unet_down_2d_bayesian.1} parent=5 // pred_fallthru
      _
    %p159 = scmp.le.s32.totalorder 1, %s9
    %p160 = scmp.lt.s32.totalorder %s9, 3
    %p161 = pnand %p159, %p160
    %p162 = pneg %p161
    // Predicated region
    $region29: #{unet_down_2d_bayesian.1} parent=5 // pred_check
      _
    $region30: #{unet_down_2d_bayesian.1} parent=5 // pred_check_branch
      %164 = sbr.rel (%p161) target = $region32
    $region31: #{unet_down_2d_bayesian.1} parent=5 // pred_region
      %s165 = ssub.s32 %s9, 1
      %p166 = scmp.lt.s32.totalorder %s18, 1
      %s167 = scalar_select %p166, %s18, 1
      %s168 = smul.addr %s167, 8
      %s169 = smul.addr %s168, 4
      %s170 = scalar_lea.vmem %s0, %s169
      %p171 = pneg %p47
      %p172 = pneg %p44
      %p173 = scmp.lt.s32.totalorder %s19, 0
      %s174 = scalar_select %p173, %s19, 0
      %s175 = smul.addr %s174, 4
      %s176 = scalar_lea.vmem %s1, %s175
      %p177 = pneg %p73
      %p178 = pneg %p70
      %p179 = pneg %p94
      %p180 = pneg %p91
      %p181 = pneg %p122
      %p182 = pneg %p119
      %p183 = scmp.lt.s32.totalorder %s18, 1
      %s184 = scalar_select %p183, %s18, 1
      %p185 = scmp.lt.s32.totalorder %s19, 0
      %s186 = scalar_select %p185, %s19, 0
      %s187 = sadd.s32 %s186, %s184
      %s188 = smul.addr %s187, 8
      %s189 = scalar_lea.vmem %s3, %s188
      %p190 = scmp.lt.s32.totalorder %s18, 1
      %s191 = scalar_select %p190, %s18, 1
      %s192 = smul.addr %s191, 8
      %s193 = smul.addr %s192, 4
      %s194 = scalar_lea.vmem %s0, %s193
      %p195 = scmp.lt.s32.totalorder %s19, 0
      %s196 = scalar_select %p195, %s19, 0
      %s197 = smul.addr %s196, 4
      %s198 = scalar_lea.vmem %s1, %s197
      %p199 = scmp.lt.s32.totalorder %s18, 1
      %s200 = scalar_select %p199, %s18, 1
      %p201 = scmp.lt.s32.totalorder %s19, 0
      %s202 = scalar_select %p201, %s19, 0
      %s203 = sadd.s32 %s202, %s200
      %s204 = smul.addr %s203, 8
      %s205 = scalar_lea.vmem %s3, %s204
      %v206 = vld [vmem:[%s194] sm:$0xf]
      %207 = vst [vmem:[#allocation2] sm:$0xf] %v206
      %v208 = vld [vmem:[%s194] sm:$0xff]
      %210 = vrot.lane.b32.xlu0 %v208, 127
      %v211 = vpop.permute.xlu0 %210
      %v212 = vrot.slane %v211, 4
      %vm213 = vcmask 1039360
      %v214 = vsel %vm213, %v211, %v212
      %216 = vst [vmem:[#allocation2 + $0x4] sm:$0xf] %v214
      %v217 = vld [vmem:[%s194] sm:$0xff]
      %219 = vrot.lane.b32.xlu0 %v217, 119
      %v220 = vpop.permute.xlu0 %219
      %v221 = vrot.slane %v220, 4
      %vm222 = vcmask 973824
      %v223 = vsel %vm222, %v220, %v221
      %225 = vst [vmem:[#allocation2 + $0x8] sm:$0xf] %v223
      %v226 = vld [vmem:[%s194] sm:$0xff]
      %228 = vrot.lane.b32.xlu0 %v226, 118
      %v229 = vpop.permute.xlu0 %228
      %v230 = vrot.slane %v229, 4
      %vm231 = vcmask 965632
      %v232 = vsel %vm231, %v229, %v230
      %234 = vst [vmem:[#allocation2 + $0xc] sm:$0xf] %v232
      %s235 = scalar_lea.vmem %s194, 8
      %v236 = vld [vmem:[%s235] sm:$0xf]
      %237 = vst [vmem:[#allocation2 + $0x10] sm:$0xf] %v236
      %v238 = vld [vmem:[%s235] sm:$0xff]
      %240 = vrot.lane.b32.xlu0 %v238, 127
      %v241 = vpop.permute.xlu0 %240
      %v242 = vrot.slane %v241, 4
      %v243 = vsel %vm213, %v241, %v242
      %245 = vst [vmem:[#allocation2 + $0x14] sm:$0xf] %v243
      %v246 = vld [vmem:[%s235] sm:$0xff]
      %248 = vrot.lane.b32.xlu0 %v246, 119
      %v249 = vpop.permute.xlu0 %248
      %v250 = vrot.slane %v249, 4
      %v251 = vsel %vm222, %v249, %v250
      %253 = vst [vmem:[#allocation2 + $0x18] sm:$0xf] %v251
      %v254 = vld [vmem:[%s235] sm:$0xff]
      %256 = vrot.lane.b32.xlu0 %v254, 118
      %v257 = vpop.permute.xlu0 %256
      %v258 = vrot.slane %v257, 4
      %v259 = vsel %vm231, %v257, %v258
      %261 = vst [vmem:[#allocation2 + $0x1c] sm:$0xf] %v259
      %s262 = scalar_lea.vmem %s194, 16
      %v263 = vld [vmem:[%s262] sm:$0xf]
      %264 = vst [vmem:[#allocation2 + $0x20] sm:$0xf] %v263
      %v265 = vld [vmem:[%s262] sm:$0xff]
      %267 = vrot.lane.b32.xlu0 %v265, 127
      %v268 = vpop.permute.xlu0 %267
      %v269 = vrot.slane %v268, 4
      %v270 = vsel %vm213, %v268, %v269
      %272 = vst [vmem:[#allocation2 + $0x24] sm:$0xf] %v270
      %v273 = vld [vmem:[%s262] sm:$0xff]
      %275 = vrot.lane.b32.xlu0 %v273, 119
      %v276 = vpop.permute.xlu0 %275
      %v277 = vrot.slane %v276, 4
      %v278 = vsel %vm222, %v276, %v277
      %280 = vst [vmem:[#allocation2 + $0x28] sm:$0xf] %v278
      %v281 = vld [vmem:[%s262] sm:$0xff]
      %283 = vrot.lane.b32.xlu0 %v281, 118
      %v284 = vpop.permute.xlu0 %283
      %v285 = vrot.slane %v284, 4
      %v286 = vsel %vm231, %v284, %v285
      %288 = vst [vmem:[#allocation2 + $0x2c] sm:$0xf] %v286
      %s289 = scalar_lea.vmem %s194, 24
      %v290 = vld [vmem:[%s289] sm:$0xf]
      %291 = vst [vmem:[#allocation2 + $0x30] sm:$0xf] %v290
      %v292 = vld [vmem:[%s289] sm:$0xff]
      %294 = vrot.lane.b32.xlu0 %v292, 127
      %v295 = vpop.permute.xlu0 %294
      %v296 = vrot.slane %v295, 4
      %v297 = vsel %vm213, %v295, %v296
      %299 = vst [vmem:[#allocation2 + $0x34] sm:$0xf] %v297
      %v300 = vld [vmem:[%s289] sm:$0xff]
      %302 = vrot.lane.b32.xlu0 %v300, 119
      %v303 = vpop.permute.xlu0 %302
      %v304 = vrot.slane %v303, 4
      %v305 = vsel %vm222, %v303, %v304
      %307 = vst [vmem:[#allocation2 + $0x38] sm:$0xf] %v305
      %v308 = vld [vmem:[%s289] sm:$0xff]
      %310 = vrot.lane.b32.xlu0 %v308, 118
      %v311 = vpop.permute.xlu0 %310
      %v312 = vrot.slane %v311, 4
      %v313 = vsel %vm231, %v311, %v312
      %315 = vst [vmem:[#allocation2 + $0x3c] sm:$0xf] %v313
      %v316 = vld [vmem:[%s198] sm:$0xf]
      %v317 = vld [vmem:[#allocation2] sm:$0xf]
      %v318 = vld [vmem:[#allocation2 + $0x4] sm:$0xf]
      %v319 = vld [vmem:[#allocation2 + $0x8] sm:$0xf]
      %v320 = vld [vmem:[#allocation2 + $0xc] sm:$0xf]
      %v321 = vld [vmem:[#allocation2 + $0x10] sm:$0xf]
      %v322 = vld [vmem:[#allocation2 + $0x14] sm:$0xf]
      %v323 = vld [vmem:[#allocation2 + $0x18] sm:$0xf]
      %v324 = vld [vmem:[#allocation2 + $0x1c] sm:$0xf]
      %v325 = vld [vmem:[#allocation2 + $0x20] sm:$0xf]
      %v326 = vld [vmem:[#allocation2 + $0x24] sm:$0xf]
      %v327 = vld [vmem:[#allocation2 + $0x28] sm:$0xf]
      %v328 = vld [vmem:[#allocation2 + $0x2c] sm:$0xf]
      %v329 = vld [vmem:[#allocation2 + $0x30] sm:$0xf]
      %v330 = vld [vmem:[#allocation2 + $0x34] sm:$0xf]
      %v331 = vld [vmem:[#allocation2 + $0x38] sm:$0xf]
      %v332 = vld [vmem:[#allocation2 + $0x3c] sm:$0xf]
      %v349 = vunpack.c.l.b16 %v317
      %v350 = vunpack.c.l.b16 %v318
      %v351 = vunpack.c.l.b16 %v319
      %v352 = vunpack.c.l.b16 %v320
      %v353 = vunpack.c.l.b16 %v321
      %v354 = vunpack.c.l.b16 %v322
      %v355 = vunpack.c.l.b16 %v323
      %v356 = vunpack.c.l.b16 %v324
      %v357 = vunpack.c.l.b16 %v325
      %v358 = vunpack.c.l.b16 %v326
      %v359 = vunpack.c.l.b16 %v327
      %v360 = vunpack.c.l.b16 %v328
      %v361 = vunpack.c.l.b16 %v329
      %v362 = vunpack.c.l.b16 %v330
      %v363 = vunpack.c.l.b16 %v331
      %v364 = vunpack.c.l.b16 %v332
      %v365 = vpack.c.b16 %v350, %v349
      %v366 = vpack.c.b16 %v352, %v351
      %v367 = vpack.c.b16 %v354, %v353
      %v368 = vpack.c.b16 %v356, %v355
      %v369 = vpack.c.b16 %v358, %v357
      %v370 = vpack.c.b16 %v360, %v359
      %v371 = vpack.c.b16 %v362, %v361
      %v372 = vpack.c.b16 %v364, %v363
      %381 = vmatpush.bf16.msra.mxu0 %v372
      %382 = vmatpush.bf16.msra.mxu0 %v371
      %383 = vmatpush.bf16.msra.mxu0 %v370
      %384 = vmatpush.bf16.msra.mxu0 %v369
      %385 = vmatpush.bf16.msra.mxu0 %v368
      %386 = vmatpush.bf16.msra.mxu0 %v367
      %387 = vmatpush.bf16.msra.mxu0 %v366
      %388 = vmatpush.bf16.msra.mxu0 %v365
      %389 = vmatmul.bf16.gmra.mxu0 %v316
      %v390 = vpop.f32.mrf.mxu0
      %v391 = vadd.f32 0.0, %v390
      %v392 = vpop.f32.mrf.mxu0
      %393 = vdwg.mxu0
      %v394 = vld [vmem:[%s2] sm:$0x1]
      %v396 = vperm.slane %v394, 0
      %v398 = vmul.f32 %v391, %v396
      %399 = vadd.xlane.f32.xlu0 %v398
      %v400 = vpop.xlane.xlu0 %399
      %v401 = vmul.f32 %v400, 0.015625
      %v402 = vsub.f32 %v391, %v401
      %v403 = vmul.f32 %v402, %v396
      %v404 = vmul.f32 %v403, %v403
      %405 = vadd.xlane.f32.xlu0 %v404
      %v406 = vpop.xlane.xlu0 %405
      %v407 = vmul.f32 %v406, 0.015625
      %v408 = vadd.f32 %v407, 1e-05
      %v409 = vrsqrt.pop %v408
      %v410 = vmul.f32 %v409, %v408
      %v411 = vmul.f32 %v410, %v409
      %v412 = vmul.f32 0.5, %v411
      %v413 = vsub.f32 1.5, %v412
      %v414 = vmul.f32 %v409, %v413
      %vm415 = vweird.f32 %v408
      %vm416 = vweird.f32 %v409
      %vm417 = vmor %vm415, %vm416
      %v418 = vsel %vm417, %v409, %v414
      %v419 = vmul.f32 %v402, %v418
      %vm420 = vcmp.ge.f32.partialorder %v419, 0.0
      %v421 = vmul.f32 %v419, 0.2
      %v422 = vsel %vm420, %v419, %v421
      %vm423 = vcmask 64512
      %424 = vst.msk [vmem:[%s205] sm:$0xff] %vm423, %v422
      %426 = vrot.lane.b32.xlu0 %v422, 127
      %v427 = vpop.permute.xlu0 %426
      %vm429 = vcmask 130112
      %430 = vst.msk [vmem:[%s205] sm:$0xff] %vm429, %v427
      %431 = vrot.lane.b32.xlu0 %v422, 126
      %v432 = vpop.permute.xlu0 %431
      %vm434 = vcmask 195712
      %435 = vst.msk [vmem:[%s205] sm:$0xff] %vm434, %v432
      %436 = vrot.lane.b32.xlu0 %v422, 125
      %v437 = vpop.permute.xlu0 %436
      %vm439 = vcmask 261312
      %440 = vst.msk [vmem:[%s205] sm:$0xff] %vm439, %v437
      %441 = vrot.lane.b32.xlu0 %v422, 124
      %v442 = vpop.permute.xlu0 %441
      %vm444 = vcmask 326912
      %445 = vst.msk [vmem:[%s205] sm:$0xff] %vm444, %v442
      %446 = vrot.lane.b32.xlu0 %v422, 123
      %v447 = vpop.permute.xlu0 %446
      %vm449 = vcmask 392512
      %450 = vst.msk [vmem:[%s205] sm:$0xff] %vm449, %v447
      %451 = vrot.lane.b32.xlu0 %v422, 122
      %v452 = vpop.permute.xlu0 %451
      %vm454 = vcmask 458112
      %455 = vst.msk [vmem:[%s205] sm:$0xff] %vm454, %v452
      %456 = vrot.lane.b32.xlu0 %v422, 121
      %v457 = vpop.permute.xlu0 %456
      %vm459 = vcmask 523712
      %460 = vst.msk [vmem:[%s205] sm:$0xff] %vm459, %v457
      %vm461 = vcmask 1048064
      %462 = vst.msk [vmem:[%s205] sm:$0xff] %vm461, 0.0
      %p463 = scmp.lt.s32.totalorder %s18, 1
      %s464 = scalar_select %p463, %s18, 1
      %p465 = scmp.lt.s32.totalorder %s19, 0
      %s466 = scalar_select %p465, %s19, 0
      %s467 = sadd.s32 %s466, %s464
      %s468 = smul.addr %s467, 8
      %s469 = scalar_lea.vmem %s3, %s468
      // Predicated region
      $region33: #{unet_down_2d_bayesian.1} parent=31 // pred_check
        %p470 = pneg %p119
      $region34: #{unet_down_2d_bayesian.1} parent=31 // pred_check_branch
        %472 = sbr.rel (%p470) target = $region36
      $region35: #{unet_down_2d_bayesian.1} parent=31 // pred_region
        _
      $region36: #{unet_down_2d_bayesian.1} parent=31 // pred_fallthru
        _
    $region32: #{unet_down_2d_bayesian.1} parent=5 // pred_fallthru
      _
    %p473 = scmp.le.s32.totalorder 2, %s9
    // Predicated region
    $region37: #{unet_down_2d_bayesian.1} parent=5 // pred_check
      %p474 = pneg %p473
    $region38: #{unet_down_2d_bayesian.1} parent=5 // pred_check_branch
      %476 = sbr.rel (%p474) target = $region40
    $region39: #{unet_down_2d_bayesian.1} parent=5 // pred_region
      %s477 = ssub.s32 %s9, 2
      // Predicated region
      $region41: #{unet_down_2d_bayesian.1} parent=39 // pred_check
        %p478 = pneg %p125
      $region42: #{unet_down_2d_bayesian.1} parent=39 // pred_check_branch
        %480 = sbr.rel (%p478) target = $region44
      $region43: #{unet_down_2d_bayesian.1} parent=39 // pred_region
        %p481 = scmp.lt.s32.totalorder %s20, 1
        %s482 = scalar_select %p481, %s20, 1
        %p483 = scmp.lt.s32.totalorder %s21, 0
        %s484 = scalar_select %p483, %s21, 0
        %s485 = sadd.s32 %s484, %s482
        %s486 = smul.addr %s485, 8
        %s487 = scalar_lea.vmem %s3, %s486
      $region44: #{unet_down_2d_bayesian.1} parent=39 // pred_fallthru
        _
    $region40: #{unet_down_2d_bayesian.1} parent=5 // pred_fallthru
      _
  $region6: #{unet_down_2d_bayesian.1} parent=0 // loop_footer
    %s13 = sadd.s32 1, %s9
  $region7: #{unet_down_2d_bayesian.1} parent=0 // loop_footer_branch
    %8 = sbr.rel target = $region3
  $region8: #{unet_down_2d_bayesian.1} parent=0 // loop_exit
    _

</llo_original>
